<compile_context>
chip_gen: v5e
topology: v5e:2x2
jax: 0.10.0
libtpu: 0.0.40
codegen_flags: <defaults>
</compile_context>

<pallas_src>
import jax
import jax.numpy as jnp
from jax import lax
from jax.experimental import pallas as pl
from jax.experimental.pallas import tpu as pltpu


# ---------------------------------------------------------------------------
# Kernels
# ---------------------------------------------------------------------------
def _row_inv_scale(x_ref):
    # F.normalize(x, dim=-1) (eps=1e-12) fused with the /0.1 temperature:
    #   x / max(||x||, 1e-12) / 0.1 == x * (rsqrt(max(sum(x^2), 1e-24)) * 10)
    x = x_ref[...].astype(jnp.float32)
    sq = jnp.sum(x * x, axis=-1, keepdims=True)
    return lax.rsqrt(jnp.maximum(sq, 1e-24)) * 10.0  # EUP rsqrt, temp folded in


def _logits(x_ref, w_ref):
    # x: (tm, in_dim); w: (tn, in_dim) in PyTorch Linear layout.
    # Contract the last dim of both (q @ k.T pattern) -> no wrapper transpose,
    # f32 MXU accumulator.  x is only cast if the weight dtype differs.
    return lax.dot_general(
        x_ref[...].astype(w_ref.dtype),
        w_ref[...],
        dimension_numbers=(((1,), (1,)), ((), ())),
        preferred_element_type=jnp.float32,
    )


def _frost_head_kernel(x_ref, w_ref, o_ref):
    # Single-N-tile / recompute path: row scale applied to the f32 accumulator.
    o_ref[...] = (_logits(x_ref, w_ref) * _row_inv_scale(x_ref)).astype(o_ref.dtype)


def _frost_head_kernel_cached(x_ref, w_ref, o_ref, inv_ref):
    # Multi-N-tile path: the per-row inverse-norm scale is computed once at
    # j == 0 and reused from the persistent VMEM scratch for j > 0.
    j = pl.program_id(0)
    i = pl.program_id(1)

    @pl.when(j == 0)
    def _():
        inv_ref[i] = _row_inv_scale(x_ref)

    o_ref[...] = (_logits(x_ref, w_ref) * inv_ref[i]).astype(o_ref.dtype)


# ---------------------------------------------------------------------------
# Wrapper
# ---------------------------------------------------------------------------
def _round_up(v, m):
    return (v + m - 1) // m * m


def frost_head(x, weight, *, tm=None, tn=None):
    """FRoSTHead forward.

    x:      (B, in_dim) activations (f32 or bf16).
    weight: (out_dim, in_dim) PyTorch Linear layout, bias=False (f32 or bf16).
            Passing bf16 x / weight halves the dominant HBM traffic; the norm
            and matmul accumulator stay f32 inside the kernel.
    """
    B, in_dim = x.shape
    out_dim, in_dim_w = weight.shape
    assert in_dim == in_dim_w

    sx = jnp.dtype(x.dtype).itemsize
    sw = jnp.dtype(weight.dtype).itemsize
    so = sx  # output dtype follows x

    # Native sublane multiple for the activation/output dtype (8 f32, 16 bf16, 32 int8).
    sub_m = 8 * max(1, 4 // sx)

    # --- VMEM budget (v5e/v6e: 128 MiB, v7x: 64 MiB). Conservative fallback.
    try:
        vmem_cap = int(pltpu.get_tpu_info().vmem_capacity_bytes)
    except Exception:
        vmem_cap = 64 << 20
    budget = int(vmem_cap * 0.6)

    if tm is None:
        tm = 512 if vmem_cap >= (100 << 20) else 256  # bigger tiles on big-VMEM chips
    if tn is None:
        tn = 512

    # --- M (batch) tile.
    tm_eff = _round_up(min(tm, _round_up(B, sub_m)), sub_m)

    def step_bytes(tm_, tn_):
        # Double-buffered pipeline blocks + f32 staging (norm + accumulator).
        return (2 * (tm_ * in_dim * sx + tn_ * in_dim * sw + tm_ * tn_ * so)
                + tm_ * in_dim * 4 + tm_ * tn_ * 4)

    # --- N (out_dim) tile: lane-dense multiple of 128.  Among VMEM-feasible
    # candidates, minimize total HBM bytes (weight once + x per N tile + output).
    out_128 = _round_up(out_dim, 128)
    tn_cap = max(128, (min(tn, out_128) // 128) * 128)
    candidates = [c for c in range(128, tn_cap + 1, 128)
                  if step_bytes(tm_eff, c) <= budget] or [128]
    best = None
    for tn_c in candidates:
        out_pad_c = _round_up(out_128, tn_c)
        gn_c = out_pad_c // tn_c
        hbm = (sw * in_dim * out_pad_c       # weight streamed once
               + gn_c * sx * B * in_dim      # x re-read per N tile
               + so * B * out_pad_c)         # output
        if best is None or (hbm, gn_c) < (best[0], best[1]):
            best = (hbm, gn_c, tn_c, out_pad_c)
    _, grid_n, tn_eff, out_pad = best

    # --- If still over budget (very large in_dim), shrink the M tile.
    while step_bytes(tm_eff, tn_eff) > budget and tm_eff > sub_m:
        tm_eff = max(sub_m, _round_up(max(tm_eff // 2, sub_m), sub_m))

    grid_m = pl.cdiv(B, tm_eff)

    # --- v7x megacore: make sure the shardable batch axis has >= 2 steps.
    if grid_m < 2 and B >= 2 * sub_m:
        tm_eff = _round_up(pl.cdiv(B, 2), sub_m)
        grid_m = pl.cdiv(B, tm_eff)

    # --- Weight stays (out_dim, in_dim); only a row pad when out_dim isn't
    # already tile-aligned (choose out_dim as a multiple of 128 to skip it).
    w = weight
    if out_pad != out_dim:
        w = jnp.pad(w, ((0, out_pad - out_dim), (0, 0)))

    # --- Cache the per-row inverse-norm across N tiles when there is reuse
    # and the (grid_m, tm, 1) scratch is cheap.
    scratch_bytes = grid_m * tm_eff * 512  # lane-padded f32 column vector
    use_cache = (grid_n > 1
                 and scratch_bytes <= (8 << 20)
                 and step_bytes(tm_eff, tn_eff) + scratch_bytes <= int(0.85 * vmem_cap))

    if use_cache:
        kernel = _frost_head_kernel_cached
        scratch_shapes = [pltpu.VMEM((grid_m, tm_eff, 1), jnp.float32)]
        semantics = ("arbitrary", "parallel")   # j carries the inv-norm reuse
    else:
        kernel = _frost_head_kernel
        scratch_shapes = []
        scratch_bytes = 0
        semantics = ("parallel", "parallel")

    cost = pl.CostEstimate(
        flops=2 * B * in_dim * out_pad + 2 * B * in_dim,
        transcendentals=B if use_cache else B * grid_n,
        bytes_accessed=int(sw * in_dim * out_pad
                           + grid_n * sx * B * in_dim
                           + so * B * out_pad),
    )

    vmem_limit = int(min(
        vmem_cap,
        max(32 << 20,
            (step_bytes(tm_eff, tn_eff) + scratch_bytes) * 3 // 2 + (2 << 20)),
    ))

    out = pl.pallas_call(
        kernel,
        out_shape=jax.ShapeDtypeStruct((B, out_pad), x.dtype),
        grid_spec=pltpu.PrefetchScalarGridSpec(
            num_scalar_prefetch=0,
            # j (N tiles) slow so each weight tile is DMA'd exactly once;
            # i (batch tiles) fast and shardable across TensorCores.
            grid=(grid_n, grid_m),
            in_specs=[
                pl.BlockSpec((tm_eff, in_dim), lambda j, i: (i, 0)),
                pl.BlockSpec((tn_eff, in_dim), lambda j, i: (j, 0)),
            ],
            out_specs=pl.BlockSpec((tm_eff, tn_eff), lambda j, i: (i, j)),
            scratch_shapes=scratch_shapes,
        ),
        compiler_params=pltpu.CompilerParams(
            dimension_semantics=semantics,
            vmem_limit_bytes=vmem_limit,
        ),
        cost_estimate=cost,
    )(x, w)

    if out_pad != out_dim:
        out = out[:, :out_dim]
    return out


# ---------------------------------------------------------------------------
# Reference + tests
# ---------------------------------------------------------------------------
def _reference(x, weight):
    xf = x.astype(jnp.float32)
    wf = weight.astype(jnp.float32)
    x_n = xf / jnp.maximum(
        jnp.sqrt(jnp.sum(xf * xf, axis=-1, keepdims=True)), 1e-12
    )
    return jnp.dot(x_n, wf.T, precision=lax.Precision.HIGHEST) / 0.1


if __name__ == "__main__":
    key = jax.random.PRNGKey(0)
    k1, k2, k3, k4, k5, k6 = jax.random.split(key, 6)

    # --- 1) Small shapes consistent with the module (single tile, f32).
    B, in_dim, out_dim = 8, 32, 16
    x = jax.random.normal(k1, (B, in_dim), dtype=jnp.float32)
    w = jax.random.normal(k2, (out_dim, in_dim), dtype=jnp.float32) * 0.02
    out = jax.block_until_ready(frost_head(x, w))
    ref = _reference(x, w)
    assert out.shape == (B, out_dim)
    assert jnp.allclose(out, ref, atol=1e-3, rtol=1e-3)

    # --- 2) Partial M tiles + multiple N tiles: exercises the cached inv-norm
    #        kernel, padded lane-dense stores, f32 semantics.
    B2, in2, out2 = 300, 256, 200
    x2 = jax.random.normal(k3, (B2, in2), dtype=jnp.float32)
    w2 = jax.random.normal(k4, (out2, in2), dtype=jnp.float32) * 0.05
    out2_k = jax.block_until_ready(frost_head(x2, w2, tm=128, tn=128))
    ref2 = _reference(x2, w2)
    assert out2_k.shape == (B2, out2)
    assert jnp.allclose(out2_k, ref2, atol=2e-3, rtol=2e-3)

    # --- 3) bf16 activations + weight (halved HBM traffic path); norm and
    #        matmul accumulator stay f32 in-kernel.  Also exercises the
    #        two-step batch split for the megacore path.
    B3, in3, out3 = 256, 128, 64
    x3 = jax.random.normal(k5, (B3, in3), dtype=jnp.float32).astype(jnp.bfloat16)
    w3 = (jax.random.normal(k6, (out3, in3), dtype=jnp.float32) * 0.05).astype(jnp.bfloat16)
    out3_k = jax.block_until_ready(frost_head(x3, w3))
    ref3 = _reference(x3, w3)
    assert out3_k.shape == (B3, out3)
    assert jnp.allclose(out3_k.astype(jnp.float32), ref3, atol=5e-2, rtol=5e-2)

    print("KERNEL_OK")
</pallas_src>

<mosaic_0001>
module attributes {stable_mosaic.version = 11 : i64} {
  func.func @_frost_head_kernel(%arg0: i32, %arg1: i32, %arg2: memref<8x32xf32, #tpu.memory_space<vmem>>, %arg3: memref<128x32xf32, #tpu.memory_space<vmem>>, %arg4: memref<8x128xf32, #tpu.memory_space<vmem>>) attributes {dimension_semantics = [#tpu.dimension_semantics<parallel>, #tpu.dimension_semantics<parallel>], iteration_bounds = array<i64: 1, 1>, scalar_prefetch = 0 : i64, scratch_operands = 0 : i64, tpu.core_type = #tpu.core_type<tc>, window_params = [{transform_indices = @transform_0, window_bounds = array<i64: 8, 32>}, {transform_indices = @transform_1, window_bounds = array<i64: 128, 32>}, {transform_indices = @transform_2, window_bounds = array<i64: 8, 128>}]} {
    %c0 = arith.constant 0 : index
    %c0_0 = arith.constant 0 : index
    %0 = vector.load %arg2[%c0, %c0_0] : memref<8x32xf32, #tpu.memory_space<vmem>>, vector<8x32xf32>
    %c0_1 = arith.constant 0 : index
    %c0_2 = arith.constant 0 : index
    %1 = vector.load %arg3[%c0_1, %c0_2] : memref<128x32xf32, #tpu.memory_space<vmem>>, vector<128x32xf32>
    %cst = arith.constant dense<0.000000e+00> : vector<8x128xf32>
    %2 = tpu.matmul %0, %1, %cst {dimension_numbers = #tpu.dot_dimension_numbers<[1], [1], [0], [0], [0, 0, 1, 0], [], []>} : vector<8x32xf32>, vector<128x32xf32>, vector<8x128xf32> -> vector<8x128xf32>
    %c0_3 = arith.constant 0 : index
    %c0_4 = arith.constant 0 : index
    %3 = vector.load %arg2[%c0_3, %c0_4] : memref<8x32xf32, #tpu.memory_space<vmem>>, vector<8x32xf32>
    %4 = arith.mulf %3, %3 : vector<8x32xf32>
    %cst_5 = arith.constant dense<0.000000e+00> : vector<8xf32>
    %5 = vector.multi_reduction <add>, %4, %cst_5 [1] : vector<8x32xf32> to vector<8xf32>
    %6 = vector.shape_cast %5 : vector<8xf32> to vector<8x1xf32>
    %cst_6 = arith.constant 1.000000e-24 : f32
    %7 = vector.broadcast %cst_6 : f32 to vector<8x1xf32>
    %8 = arith.maximumf %6, %7 : vector<8x1xf32>
    %9 = math.rsqrt %8 : vector<8x1xf32>
    %cst_7 = arith.constant 1.000000e+01 : f32
    %10 = vector.broadcast %cst_7 : f32 to vector<8x1xf32>
    %11 = arith.mulf %9, %10 : vector<8x1xf32>
    %12 = vector.broadcast %11 : vector<8x1xf32> to vector<8x128xf32>
    %13 = arith.mulf %2, %12 : vector<8x128xf32>
    %c0_8 = arith.constant 0 : index
    %c0_9 = arith.constant 0 : index
    %14 = vector.load %arg4[%c0_8, %c0_9] : memref<8x128xf32, #tpu.memory_space<vmem>>, vector<8x128xf32>
    tpu.vector_store %arg4[%c0_8, %c0_9], %13 {strides = array<i32>} : memref<8x128xf32, #tpu.memory_space<vmem>>, vector<8x128xf32>,
    return
  }
  func.func @transform_0(%arg0: i32, %arg1: i32) -> (i32, i32) {
    %c0_i32 = arith.constant 0 : i32
    %c0_i32_0 = arith.constant 0 : i32
    return %arg1, %c0_i32 : i32, i32
  }
  func.func @transform_1(%arg0: i32, %arg1: i32) -> (i32, i32) {
    %c0_i32 = arith.constant 0 : i32
    %c0_i32_0 = arith.constant 0 : i32
    return %arg0, %c0_i32 : i32, i32
  }
  func.func @transform_2(%arg0: i32, %arg1: i32) -> (i32, i32) {
    %c0_i32 = arith.constant 0 : i32
    return %arg1, %arg0 : i32, i32
  }
}

</mosaic_0001>

<llo_original>
// kernel: tpu_custom_call.1
$region0: #{tpu_custom_call.1}
  #allocation0 [shape = 'u32[]', space=smem, size = 0x4, offset = 0x4, fixed_abs, tag = 'smem constant byte address 0x4 - core index']
  #allocation1 [shape = 'u32[72,128]{1,0:T(1,128)}', space=vmem, size = 0x9000, scoped, tag = 'internal scratch']
  %s0 = inlined_call_operand.vmem [shape: f32[8,32], index: 0, kind: input, shape index: {}]
  %s1 = inlined_call_operand.vmem [shape: f32[128,32], index: 1, kind: input, shape index: {}]
  %s2 = inlined_call_operand.hbm [shape: f32[8,128], index: 2, kind: output, shape index: {}]
  %s3 = sld [smem:[#allocation0]]
  $region18: #{tpu_custom_call.1} parent=0
    _
  %s5 = ssub.s32 1, %s3
  %s6 = scalar_select 0, %s5, %s3
  $region1: #{tpu_custom_call.1} parent=0
    #allocation2 [shape = 'u8[4096]{0}', space=vmem, size = 0x1000, scoped, tag = 'output window, operand 0, single buffered']
    #allocation3 [shape = 's32[1]{0}', space=sflag, size = 0x4, scoped, tag = 'scoped memory for tpu_custom_call.1']
    %7 = vsyncpa [#allocation3], 0
    // Predicated region
    $region2: #{tpu_custom_call.1} parent=1 // pred_check
      _
    $region3: #{tpu_custom_call.1} parent=1 // pred_check_branch
      %9 = sbr.rel (0) target = $region5
    $region4: #{tpu_custom_call.1} parent=1 // pred_region
      _
    $region5: #{tpu_custom_call.1} parent=1 // pred_fallthru
      _
    // Predicated region
    $region6: #{tpu_custom_call.1} parent=1 // pred_check
      _
    $region7: #{tpu_custom_call.1} parent=1 // pred_check_branch
      %11 = sbr.rel (0) target = $region9
    $region8: #{tpu_custom_call.1} parent=1 // pred_region
      _
    $region9: #{tpu_custom_call.1} parent=1 // pred_fallthru
      _
    %v12 = vld [vmem:[%s0] sm:$0xff]
    %v13 = vld [vmem:[%s1] sm:$0xff]
    %v14 = vld [vmem:[%s1 + $0x8] sm:$0xff]
    %v15 = vld [vmem:[%s1 + $0x10] sm:$0xff]
    %v16 = vld [vmem:[%s1 + $0x18] sm:$0xff]
    %v17 = vld [vmem:[%s1 + $0x20] sm:$0xff]
    %v18 = vld [vmem:[%s1 + $0x28] sm:$0xff]
    %v19 = vld [vmem:[%s1 + $0x30] sm:$0xff]
    %v20 = vld [vmem:[%s1 + $0x38] sm:$0xff]
    %v21 = vld [vmem:[%s1 + $0x40] sm:$0xff]
    %v22 = vld [vmem:[%s1 + $0x48] sm:$0xff]
    %v23 = vld [vmem:[%s1 + $0x50] sm:$0xff]
    %v24 = vld [vmem:[%s1 + $0x58] sm:$0xff]
    %v25 = vld [vmem:[%s1 + $0x60] sm:$0xff]
    %v26 = vld [vmem:[%s1 + $0x68] sm:$0xff]
    %v27 = vld [vmem:[%s1 + $0x70] sm:$0xff]
    %v28 = vld [vmem:[%s1 + $0x78] sm:$0xff]
    %vm29 = vcmask 261120
    %v31 = vsel %vm29, %v12, 0
    %v34 = vsel %vm29, %v13, 0
    %v37 = vsel %vm29, %v14, 0
    %v40 = vsel %vm29, %v15, 0
    %v43 = vsel %vm29, %v16, 0
    %v46 = vsel %vm29, %v17, 0
    %v49 = vsel %vm29, %v18, 0
    %v52 = vsel %vm29, %v19, 0
    %v55 = vsel %vm29, %v20, 0
    %v58 = vsel %vm29, %v21, 0
    %v61 = vsel %vm29, %v22, 0
    %v64 = vsel %vm29, %v23, 0
    %v67 = vsel %vm29, %v24, 0
    %v70 = vsel %vm29, %v25, 0
    %v73 = vsel %vm29, %v26, 0
    %v76 = vsel %vm29, %v27, 0
    %v79 = vsel %vm29, %v28, 0
    %81 = vmatpush.xpose.msra.mxu0 %v79
    %82 = vmatpush.xpose.msra.mxu0 %v76
    %83 = vmatpush.xpose.msra.mxu0 %v73
    %84 = vmatpush.xpose.msra.mxu0 %v70
    %85 = vmatpush.xpose.msra.mxu0 %v67
    %86 = vmatpush.xpose.msra.mxu0 %v64
    %87 = vmatpush.xpose.msra.mxu0 %v61
    %88 = vmatpush.xpose.msra.mxu0 %v58
    %89 = vmatpush.xpose.msra.mxu0 %v55
    %90 = vmatpush.xpose.msra.mxu0 %v52
    %91 = vmatpush.xpose.msra.mxu0 %v49
    %92 = vmatpush.xpose.msra.mxu0 %v46
    %93 = vmatpush.xpose.msra.mxu0 %v43
    %94 = vmatpush.xpose.msra.mxu0 %v40
    %95 = vmatpush.xpose.msra.mxu0 %v37
    %96 = vmatpush.xpose.msra.mxu0 %v34
    %97 = vmatmul.f32.gmra.mxu0 %v31
    %v98 = vpop.f32.mrf.mxu0
    %v99 = vadd.f32 0.0, %v98
    %100 = vdwg.mxu0
    %v101 = vmul.f32 %v12, %v12
    %v102 = vsel %vm29, %v101, 0.0
    %103 = vadd.xlane.f32.xlu0 %v102
    %v104 = vpop.xlane.xlu0 %103
    %v105 = vmax.f32 %v104, 1e-24
    %v106 = vrsqrt.pop %v105
    %v107 = vmul.f32 %v106, %v105
    %v108 = vmul.f32 %v107, %v106
    %v109 = vmul.f32 0.5, %v108
    %v110 = vsub.f32 1.5, %v109
    %v111 = vmul.f32 %v106, %v110
    %vm112 = vweird.f32 %v105
    %vm113 = vweird.f32 %v106
    %vm114 = vmor %vm112, %vm113
    %v115 = vsel %vm114, %v106, %v111
    %v116 = vmul.f32 %v115, 10.0
    %v117 = vmul.f32 %v99, %v116
    %118 = vst [vmem:[#allocation2] sm:$0xff] %v117
    // Predicated region
    $region10: #{tpu_custom_call.1} parent=1 // pred_check
      _
    $region11: #{tpu_custom_call.1} parent=1 // pred_check_branch
      %120 = sbr.rel (0) target = $region13
    $region12: #{tpu_custom_call.1} parent=1 // pred_region
      %122 = vsyncadd [#allocation3], 0
      %s124 = sshll.u32 [#allocation2], 4
      %s125 = int_to_ptr.vmem [resolvable:$true] %s124
      %s126 = sshll.u32 %s2, 4
      %s127 = int_to_ptr.hbm [resolvable:$true] %s126
      %129 = dma.vmem_to_hbm [thread:$0]  %s125, 128, %s127, [#allocation3]
    $region13: #{tpu_custom_call.1} parent=1 // pred_fallthru
      _
    // Predicated region
    $region14: #{tpu_custom_call.1} parent=1 // pred_check
      _
    $region15: #{tpu_custom_call.1} parent=1 // pred_check_branch
      %131 = sbr.rel (0) target = $region17
    $region16: #{tpu_custom_call.1} parent=1 // pred_region
      %133 = dma.done [#allocation3], 128
    $region17: #{tpu_custom_call.1} parent=1 // pred_fallthru
      _
    %134 = vsyncpa [#allocation3], 1

</llo_original>
